<compile_context>
chip_gen: v5e
topology: v5e:2x2
jax: 0.10.0
libtpu: 0.0.40
codegen_flags: <defaults>
</compile_context>

<pallas_src>
import functools

import jax
import jax.numpy as jnp
from jax.experimental import pallas as pl
from jax.experimental.pallas import tpu as pltpu


def _dice_kernel(eps, hw, hw_tile, p_ref, t_ref, dice_ref, inter_acc, denom_acc):
    # p_ref/t_ref: (R, hw_tile) tile of the flattened (B*C, H*W) inputs.
    j = pl.program_id(1)  # spatial-reduction axis (last, "arbitrary")

    @pl.when(j == 0)
    def _():
        inter_acc[...] = jnp.zeros_like(inter_acc)
        denom_acc[...] = jnp.zeros_like(denom_acc)

    p = p_ref[...].astype(jnp.float32)
    t = t_ref[...].astype(jnp.float32)

    if hw % hw_tile != 0:
        # Ragged last spatial block: zero the out-of-bounds lanes so garbage in
        # the overhang never reaches the accumulators. Static Python condition,
        # so this costs nothing when HW divides the tile exactly.
        lane = jax.lax.broadcasted_iota(jnp.int32, p.shape, dimension=1)
        valid = lane < (hw - j * hw_tile)
        p = jnp.where(valid, p, 0.0)
        t = jnp.where(valid, t, 0.0)

    # Per-row (= per (b, c) plane) partial reductions over this spatial tile.
    inter_acc[...] += jnp.sum(p * t, axis=1, keepdims=True)   # (R, 1)
    denom_acc[...] += jnp.sum(p + t, axis=1, keepdims=True)   # (R, 1) == sum(p)+sum(t)

    @pl.when(j == pl.num_programs(1) - 1)
    def _():
        dice_ref[...] = (2.0 * inter_acc[...] + eps) / (denom_acc[...] + eps)


def dice_loss(prob, onehot_target, eps=1e-9):
    """Pallas DiceLoss forward. Returns (loss, None) like the PyTorch module."""
    B, C, H, W = prob.shape
    assert onehot_target.shape == prob.shape

    N = B * C
    HW = H * W

    # Lane-dense 2D layout: (B*C, H*W). NCHW is contiguous, so this is free.
    p2d = prob.reshape(N, HW)
    t2d = onehot_target.reshape(N, HW)

    # ~4 MiB per input tile (amortizes per-step overhead on v7x; 2 inputs x 2
    # pipeline buffers x 4 MiB = 16 MiB, covered by the explicit 32 MiB limit
    # on every generation, well under v7x's 64 MiB physical VMEM).
    itemsize = jnp.dtype(prob.dtype).itemsize
    target_tile_bytes = 4 * 1024 * 1024
    elems_budget = max(128, target_tile_bytes // itemsize)

    if HW <= elems_budget:
        # Whole spatial axis fits in one block; pack as many rows as the budget
        # allows (multiple of 8 for sublane granularity), capped by the problem.
        hw_tile = HW
        rows_budget = max(8, (elems_budget // HW) // 8 * 8)
        R = int(min(rows_budget, ((N + 7) // 8) * 8))
    else:
        # Large images: tile the spatial axis (multiple of 128 lanes) and keep
        # one sublane-group of rows per step.
        hw_tile = max(128, (elems_budget // 128) * 128)
        R = 8

    num_row_blocks = pl.cdiv(N, R)     # ragged last block handled by Pallas (no pad)
    num_hw_blocks = pl.cdiv(HW, hw_tile)

    # Plain Python constants baked into the kernel (no traced closure values).
    kernel = functools.partial(_dice_kernel, float(eps), HW, hw_tile)

    cost = pl.CostEstimate(
        flops=3 * N * HW,
        transcendentals=0,
        bytes_accessed=2 * N * HW * itemsize + N * 4,
    )

    dice_rows = pl.pallas_call(
        kernel,
        out_shape=jax.ShapeDtypeStruct((N, 1), jnp.float32),
        grid_spec=pltpu.PrefetchScalarGridSpec(
            num_scalar_prefetch=0,
            grid=(num_row_blocks, num_hw_blocks),
            in_specs=[
                pl.BlockSpec((R, hw_tile), lambda i, j: (i, j)),
                pl.BlockSpec((R, hw_tile), lambda i, j: (i, j)),
            ],
            # Same output block across the reduction axis -> accumulator-resident,
            # written once on the last spatial block.
            out_specs=pl.BlockSpec((R, 1), lambda i, j: (i, 0)),
            scratch_shapes=[
                pltpu.VMEM((R, 1), jnp.float32),  # intersection accumulator
                pltpu.VMEM((R, 1), jnp.float32),  # denominator accumulator
            ],
        ),
        compiler_params=pltpu.CompilerParams(
            # Rows are independent -> parallel (v7x megacore); spatial reduction
            # axis is last and arbitrary.
            dimension_semantics=("parallel", "arbitrary"),
            vmem_limit_bytes=32 * 1024 * 1024,
        ),
        cost_estimate=cost,
    )(p2d, t2d)

    # Per-(b,c) dice -> mean over batch per channel -> mean over channels.
    # All (b,c) pairs have equal weight, so this is a flat mean over the N rows.
    dice = dice_rows[:N, 0]
    loss = 1.0 - jnp.mean(dice)
    # TODO(synk): the biggest remaining HBM-bandwidth win (integer labels with
    # in-kernel one-hot, or bf16/int8 one-hot target) requires changing the
    # module's input contract (f32 prob + f32 one-hot), so it is not done here.
    return loss, None


def dice_loss_ref(prob, onehot_target, eps=1e-9):
    """Plain-JAX reference for correctness checking."""
    inter = jnp.sum(prob * onehot_target, axis=(2, 3))
    psum = jnp.sum(prob, axis=(2, 3))
    tsum = jnp.sum(onehot_target, axis=(2, 3))
    dice = (2.0 * inter + eps) / (psum + tsum + eps)  # (B, C)
    per_channel = jnp.mean(dice, axis=0)              # reduction='mean' over batch
    mean_dice = jnp.mean(per_channel)                 # mean over channels
    return 1.0 - mean_dice


if __name__ == "__main__":
    B, C, H, W = 2, 4, 16, 16
    key = jax.random.PRNGKey(0)
    k1, k2 = jax.random.split(key)

    # prob: softmax over the channel axis (NCHW)
    logits = jax.random.normal(k1, (B, C, H, W), dtype=jnp.float32)
    prob = jax.nn.softmax(logits, axis=1)

    # onehot_target: one-hot of random class labels, NCHW
    labels = jax.random.randint(k2, (B, H, W), 0, C)
    onehot_target = jnp.transpose(
        jax.nn.one_hot(labels, C, dtype=jnp.float32), (0, 3, 1, 2)
    )

    loss, aux = dice_loss(prob, onehot_target)
    loss = jax.block_until_ready(loss)

    ref = dice_loss_ref(prob, onehot_target)
    assert jnp.allclose(loss, ref, atol=1e-5, rtol=1e-5), (loss, ref)
    assert aux is None

    print("KERNEL_OK")
</pallas_src>

<mosaic_0001>
module attributes {stable_mosaic.version = 11 : i64} {
  func.func @_dice_kernel(%arg0: i32, %arg1: i32, %arg2: memref<8x256xf32, #tpu.memory_space<vmem>>, %arg3: memref<8x256xf32, #tpu.memory_space<vmem>>, %arg4: memref<8x1xf32, #tpu.memory_space<vmem>>, %arg5: memref<8x1xf32, #tpu.memory_space<vmem>>, %arg6: memref<8x1xf32, #tpu.memory_space<vmem>>) attributes {dimension_semantics = [#tpu.dimension_semantics<parallel>, #tpu.dimension_semantics<arbitrary>], iteration_bounds = array<i64: 1, 1>, scalar_prefetch = 0 : i64, scratch_operands = 2 : i64, tpu.core_type = #tpu.core_type<tc>, window_params = [{transform_indices = @transform_0, window_bounds = array<i64: 8, 256>}, {transform_indices = @transform_1, window_bounds = array<i64: 8, 256>}, {transform_indices = @transform_2, window_bounds = array<i64: 8, 1>}]} {
    %c0_i32 = arith.constant 0 : i32
    %0 = arith.cmpi eq, %arg1, %c0_i32 : i32
    %1 = arith.extui %0 : i1 to i32
    %c0_i32_0 = arith.constant 0 : i32
    %2 = arith.cmpi ne, %1, %c0_i32_0 : i32
    scf.if %2 {
      %cst_15 = arith.constant 0.000000e+00 : f32
      %20 = vector.broadcast %cst_15 : f32 to vector<8x1xf32>
      %c0_16 = arith.constant 0 : index
      %c0_17 = arith.constant 0 : index
      %21 = vector.load %arg5[%c0_16, %c0_17] : memref<8x1xf32, #tpu.memory_space<vmem>>, vector<8x1xf32>
      tpu.vector_store %arg5[%c0_16, %c0_17], %20 {strides = array<i32>} : memref<8x1xf32, #tpu.memory_space<vmem>>, vector<8x1xf32>,
      %cst_18 = arith.constant 0.000000e+00 : f32
      %22 = vector.broadcast %cst_18 : f32 to vector<8x1xf32>
      %c0_19 = arith.constant 0 : index
      %c0_20 = arith.constant 0 : index
      %23 = vector.load %arg6[%c0_19, %c0_20] : memref<8x1xf32, #tpu.memory_space<vmem>>, vector<8x1xf32>
      tpu.vector_store %arg6[%c0_19, %c0_20], %22 {strides = array<i32>} : memref<8x1xf32, #tpu.memory_space<vmem>>, vector<8x1xf32>,
    } else {
    }
    %c0 = arith.constant 0 : index
    %c0_1 = arith.constant 0 : index
    %3 = vector.load %arg2[%c0, %c0_1] : memref<8x256xf32, #tpu.memory_space<vmem>>, vector<8x256xf32>
    %c0_2 = arith.constant 0 : index
    %c0_3 = arith.constant 0 : index
    %4 = vector.load %arg3[%c0_2, %c0_3] : memref<8x256xf32, #tpu.memory_space<vmem>>, vector<8x256xf32>
    %c0_4 = arith.constant 0 : index
    %c0_5 = arith.constant 0 : index
    %5 = vector.load %arg5[%c0_4, %c0_5] : memref<8x1xf32, #tpu.memory_space<vmem>>, vector<8x1xf32>
    %6 = arith.mulf %3, %4 : vector<8x256xf32>
    %cst = arith.constant dense<0.000000e+00> : vector<8xf32>
    %7 = vector.multi_reduction <add>, %6, %cst [1] : vector<8x256xf32> to vector<8xf32>
    %8 = vector.shape_cast %7 : vector<8xf32> to vector<8x1xf32>
    %9 = arith.addf %5, %8 : vector<8x1xf32>
    %c0_6 = arith.constant 0 : index
    %c0_7 = arith.constant 0 : index
    %10 = vector.load %arg5[%c0_6, %c0_7] : memref<8x1xf32, #tpu.memory_space<vmem>>, vector<8x1xf32>
    tpu.vector_store %arg5[%c0_6, %c0_7], %9 {strides = array<i32>} : memref<8x1xf32, #tpu.memory_space<vmem>>, vector<8x1xf32>,
    %c0_8 = arith.constant 0 : index
    %c0_9 = arith.constant 0 : index
    %11 = vector.load %arg6[%c0_8, %c0_9] : memref<8x1xf32, #tpu.memory_space<vmem>>, vector<8x1xf32>
    %12 = arith.addf %3, %4 : vector<8x256xf32>
    %cst_10 = arith.constant dense<0.000000e+00> : vector<8xf32>
    %13 = vector.multi_reduction <add>, %12, %cst_10 [1] : vector<8x256xf32> to vector<8xf32>
    %14 = vector.shape_cast %13 : vector<8xf32> to vector<8x1xf32>
    %15 = arith.addf %11, %14 : vector<8x1xf32>
    %c0_11 = arith.constant 0 : index
    %c0_12 = arith.constant 0 : index
    %16 = vector.load %arg6[%c0_11, %c0_12] : memref<8x1xf32, #tpu.memory_space<vmem>>, vector<8x1xf32>
    tpu.vector_store %arg6[%c0_11, %c0_12], %15 {strides = array<i32>} : memref<8x1xf32, #tpu.memory_space<vmem>>, vector<8x1xf32>,
    %c0_i32_13 = arith.constant 0 : i32
    %17 = arith.cmpi eq, %arg1, %c0_i32_13 : i32
    %18 = arith.extui %17 : i1 to i32
    %c0_i32_14 = arith.constant 0 : i32
    %19 = arith.cmpi ne, %18, %c0_i32_14 : i32
    scf.if %19 {
      %c0_15 = arith.constant 0 : index
      %c0_16 = arith.constant 0 : index
      %20 = vector.load %arg5[%c0_15, %c0_16] : memref<8x1xf32, #tpu.memory_space<vmem>>, vector<8x1xf32>
      %cst_17 = arith.constant 2.000000e+00 : f32
      %21 = vector.broadcast %cst_17 : f32 to vector<8x1xf32>
      %22 = arith.mulf %21, %20 : vector<8x1xf32>
      %cst_18 = arith.constant 9.99999971E-10 : f32
      %23 = vector.broadcast %cst_18 : f32 to vector<8x1xf32>
      %24 = arith.addf %22, %23 : vector<8x1xf32>
      %c0_19 = arith.constant 0 : index
      %c0_20 = arith.constant 0 : index
      %25 = vector.load %arg6[%c0_19, %c0_20] : memref<8x1xf32, #tpu.memory_space<vmem>>, vector<8x1xf32>
      %cst_21 = arith.constant 9.99999971E-10 : f32
      %26 = vector.broadcast %cst_21 : f32 to vector<8x1xf32>
      %27 = arith.addf %25, %26 : vector<8x1xf32>
      %28 = arith.divf %24, %27 : vector<8x1xf32>
      %c0_22 = arith.constant 0 : index
      %c0_23 = arith.constant 0 : index
      %29 = vector.load %arg4[%c0_22, %c0_23] : memref<8x1xf32, #tpu.memory_space<vmem>>, vector<8x1xf32>
      tpu.vector_store %arg4[%c0_22, %c0_23], %28 {strides = array<i32>} : memref<8x1xf32, #tpu.memory_space<vmem>>, vector<8x1xf32>,
    } else {
    }
    return
  }
  func.func @transform_0(%arg0: i32, %arg1: i32) -> (i32, i32) {
    %c0_i32 = arith.constant 0 : i32
    return %arg0, %arg1 : i32, i32
  }
  func.func @transform_1(%arg0: i32, %arg1: i32) -> (i32, i32) {
    %c0_i32 = arith.constant 0 : i32
    return %arg0, %arg1 : i32, i32
  }
  func.func @transform_2(%arg0: i32, %arg1: i32) -> (i32, i32) {
    %c0_i32 = arith.constant 0 : i32
    %c0_i32_0 = arith.constant 0 : i32
    return %arg0, %c0_i32 : i32, i32
  }
}

</mosaic_0001>

<llo_original>
// kernel: tpu_custom_call.1
$region0: #{tpu_custom_call.1}
  #allocation0 [shape = 'u32[]', space=smem, size = 0x4, offset = 0x4, fixed_abs, tag = 'smem constant byte address 0x4 - core index']
  #allocation1 [shape = 'u32[72,128]{1,0:T(1,128)}', space=vmem, size = 0x9000, scoped, tag = 'internal scratch']
  #allocation2 [shape = 'f32[8,1]{1,0:T(8,128)}', space=vmem, size = 0x1000, scoped, tag = 'scratch operand']
  #allocation3 [shape = 'f32[8,1]{1,0:T(8,128)}', space=vmem, size = 0x1000, scoped, tag = 'scratch operand']
  %s0 = inlined_call_operand.hbm [shape: f32[8,256], index: 0, kind: input, shape index: {}]
  %s1 = inlined_call_operand.hbm [shape: f32[8,256], index: 1, kind: input, shape index: {}]
  %s2 = inlined_call_operand.vmem [shape: f32[8,1], index: 2, kind: output, shape index: {}]
  %s3 = sld [smem:[#allocation0]]
  $region34: #{tpu_custom_call.1} parent=0
    _
  %s5 = ssub.s32 1, %s3
  %s6 = scalar_select 0, %s5, %s3
  $region1: #{tpu_custom_call.1} parent=0
    #allocation4 [shape = 'u8[8192]{0}', space=vmem, size = 0x2000, scoped, tag = 'input window, operand 0, single buffered']
    #allocation5 [shape = 's32[1]{0}', space=sflag, size = 0x4, scoped, tag = 'scoped memory for tpu_custom_call.1']
    #allocation6 [shape = 'u8[8192]{0}', space=vmem, size = 0x2000, scoped, tag = 'input window, operand 1, single buffered']
    #allocation7 [shape = 's32[1]{0}', space=sflag, size = 0x4, scoped, tag = 'scoped memory for tpu_custom_call.1']
    %7 = vsyncpa [#allocation5], 0
    %8 = vsyncpa [#allocation7], 0
    // Predicated region
    $region2: #{tpu_custom_call.1} parent=1 // pred_check
      _
    $region3: #{tpu_custom_call.1} parent=1 // pred_check_branch
      %10 = sbr.rel (0) target = $region5
    $region4: #{tpu_custom_call.1} parent=1 // pred_region
      %12 = vsyncadd [#allocation5], 0
      %s14 = sshll.u32 %s0, 4
      %s15 = int_to_ptr.hbm [resolvable:$true] %s14
      %s16 = sshll.u32 [#allocation4], 4
      %s17 = int_to_ptr.vmem [resolvable:$true] %s16
      %19 = dma.hbm_to_vmem [thread:$0]  %s15, 256, %s17, [#allocation5]
    $region5: #{tpu_custom_call.1} parent=1 // pred_fallthru
      _
    // Predicated region
    $region6: #{tpu_custom_call.1} parent=1 // pred_check
      _
    $region7: #{tpu_custom_call.1} parent=1 // pred_check_branch
      %21 = sbr.rel (0) target = $region9
    $region8: #{tpu_custom_call.1} parent=1 // pred_region
      %23 = vsyncadd [#allocation7], 0
      %s25 = sshll.u32 %s1, 4
      %s26 = int_to_ptr.hbm [resolvable:$true] %s25
      %s27 = sshll.u32 [#allocation6], 4
      %s28 = int_to_ptr.vmem [resolvable:$true] %s27
      %30 = dma.hbm_to_vmem [thread:$0]  %s26, 256, %s28, [#allocation7]
    $region9: #{tpu_custom_call.1} parent=1 // pred_fallthru
      _
    // Predicated region
    $region10: #{tpu_custom_call.1} parent=1 // pred_check
      _
    $region11: #{tpu_custom_call.1} parent=1 // pred_check_branch
      %32 = sbr.rel (0) target = $region13
    $region12: #{tpu_custom_call.1} parent=1 // pred_region
      %34 = dma.done [#allocation5], 256
    $region13: #{tpu_custom_call.1} parent=1 // pred_fallthru
      _
    // Predicated region
    $region14: #{tpu_custom_call.1} parent=1 // pred_check
      _
    $region15: #{tpu_custom_call.1} parent=1 // pred_check_branch
      %36 = sbr.rel (0) target = $region17
    $region16: #{tpu_custom_call.1} parent=1 // pred_region
      %38 = dma.done [#allocation7], 256
    $region17: #{tpu_custom_call.1} parent=1 // pred_fallthru
      _
    %p39 = scmp.eq.s32.totalorder 0, 0
    // Predicated region
    $region18: #{tpu_custom_call.1} parent=1 // pred_check
      %p40 = pneg %p39
    $region19: #{tpu_custom_call.1} parent=1 // pred_check_branch
      %42 = sbr.rel (%p40) target = $region21
    $region20: #{tpu_custom_call.1} parent=1 // pred_region
      %vm43 = vcmask 7168
      %44 = vst.msk [vmem:[#allocation2] sm:$0xff] %vm43, 0.0
      %45 = vst.msk [vmem:[#allocation3] sm:$0xff] %vm43, 0.0
    $region21: #{tpu_custom_call.1} parent=1 // pred_fallthru
      _
    %v46 = vld [vmem:[#allocation4] sm:$0xff]
    %v47 = vld [vmem:[#allocation4 + $0x8] sm:$0xff]
    %v48 = vld [vmem:[#allocation6] sm:$0xff]
    %v49 = vld [vmem:[#allocation6 + $0x8] sm:$0xff]
    %v50 = vld [vmem:[#allocation2] sm:$0xff]
    %v51 = vmul.f32 %v46, %v48
    %v52 = vmul.f32 %v47, %v49
    %v53 = vadd.f32 %v51, %v52
    %54 = vadd.xlane.f32.xlu0 %v53
    %v55 = vpop.xlane.xlu0 %54
    %v56 = vadd.f32 %v50, %v55
    %vm57 = vcmask 7168
    %58 = vst.msk [vmem:[#allocation2] sm:$0xff] %vm57, %v56
    %v59 = vld [vmem:[#allocation3] sm:$0xff]
    %v60 = vadd.f32 %v46, %v48
    %v61 = vadd.f32 %v47, %v49
    %v62 = vadd.f32 %v60, %v61
    %63 = vadd.xlane.f32.xlu0 %v62
    %v64 = vpop.xlane.xlu0 %63
    %v65 = vadd.f32 %v59, %v64
    %66 = vst.msk [vmem:[#allocation3] sm:$0xff] %vm57, %v65
    // Predicated region
    $region22: #{tpu_custom_call.1} parent=1 // pred_check
      %p67 = pneg %p39
    $region23: #{tpu_custom_call.1} parent=1 // pred_check_branch
      %69 = sbr.rel (%p67) target = $region25
    $region24: #{tpu_custom_call.1} parent=1 // pred_region
      %v70 = vld [vmem:[#allocation2] sm:$0xff]
      %v71 = vmul.f32 %v70, 2.0
      %v72 = vadd.f32 %v71, 1e-09
      %v73 = vld [vmem:[#allocation3] sm:$0xff]
      %v74 = vadd.f32 %v73, 1e-09
      %v75 = vrcp.pop %v74
      %v76 = vmul.f32 %v74, %v75
      %v77 = vsub.f32 1.0, %v76
      %v78 = vmul.f32 %v75, %v77
      %v79 = vadd.f32 %v75, %v78
      %vm80 = vweird.f32 %v74
      %vm81 = vweird.f32 %v75
      %vm82 = vmor %vm80, %vm81
      %v83 = vsel %vm82, %v75, %v79
      %v84 = vand.u32 2147483647, %v74
      %vm85 = vcmp.eq.f32.partialorder %v84, 8.507059e+37
      %v86 = vand.u32 %v74, 2147483648
      %v87 = vor.u32 1.1754944e-38, %v86
      %v88 = vsel %vm85, %v87, %v83
      %v89 = vmul.f32 %v72, %v88
      %90 = vst.msk [vmem:[%s2] sm:$0xff] %vm57, %v89
    $region25: #{tpu_custom_call.1} parent=1 // pred_fallthru
      _
    // Predicated region
    $region26: #{tpu_custom_call.1} parent=1 // pred_check
      _
    $region27: #{tpu_custom_call.1} parent=1 // pred_check_branch
      %92 = sbr.rel (0) target = $region29
    $region28: #{tpu_custom_call.1} parent=1 // pred_region
      _
    $region29: #{tpu_custom_call.1} parent=1 // pred_fallthru
      _
    // Predicated region
    $region30: #{tpu_custom_call.1} parent=1 // pred_check
      _
    $region31: #{tpu_custom_call.1} parent=1 // pred_check_branch
      %94 = sbr.rel (0) target = $region33
    $region32: #{tpu_custom_call.1} parent=1 // pred_region
      _
    $region33: #{tpu_custom_call.1} parent=1 // pred_fallthru
      _
    %95 = vsyncpa [#allocation5], 1
    %96 = vsyncpa [#allocation7], 1

</llo_original>
